<compile_context>
chip_gen: v7x
topology: tpu7x:2x2x1
jax: 0.10.0
libtpu: 0.0.40
codegen_flags: <defaults>
</compile_context>

<pallas_src>
import functools

import jax
import jax.numpy as jnp
import numpy as np
from jax.experimental import pallas as pl
from jax.experimental.pallas import tpu as pltpu

EPS = 1e-5
LANE = 128


def _round_up(n, m):
    return ((n + m - 1) // m) * m


def _pad2(a, rows, cols):
    r, c = a.shape
    return jnp.pad(a, ((0, rows - r), (0, cols - c)))


def _cparams(semantics, tile_bytes):
    # inputs/outputs are double-buffered by the pipeline; add slack, cap below
    # the v7x physical 64 MiB VMEM.
    need = 2 * tile_bytes + (2 << 20)
    limit = int(min(max(need, 16 << 20), 56 << 20))
    return pltpu.CompilerParams(dimension_semantics=semantics,
                                vmem_limit_bytes=limit)


# ---------------------------------------------------------------------------
# Pallas kernels
# ---------------------------------------------------------------------------
def _conv_stats_kernel(x_ref, w_ref, pre_ref, sum_ref, sq_ref):
    """One M-tile of the conv as a single bf16 MXU matmul (f32 accumulate),
    plus per-channel sum / sum-of-squares accumulated in the resident output
    blocks across the grid ("arbitrary" axis)."""
    i = pl.program_id(0)
    acc = jnp.dot(x_ref[...], w_ref[...], preferred_element_type=jnp.float32)
    pre_ref[...] = acc

    @pl.when(i == 0)
    def _():
        sum_ref[...] = jnp.zeros_like(sum_ref)
        sq_ref[...] = jnp.zeros_like(sq_ref)

    sum_ref[...] += jnp.sum(acc, axis=0, keepdims=True)
    sq_ref[...] += jnp.sum(acc * acc, axis=0, keepdims=True)


def _bn(pre, s, q, g, b, m_real, eps):
    """Training-mode BN from pre-computed global sum / sumsq (one-pass stats)."""
    inv_m = 1.0 / m_real
    mean = s * inv_m
    var = jnp.maximum(q * inv_m - mean * mean, 0.0)   # clamp f32 cancellation
    scale = g * jax.lax.rsqrt(var + eps)
    return pre * scale + (b - mean * scale)


def _bn_relu_kernel(pre_ref, sum_ref, sq_ref, g_ref, b_ref, out_ref, *, m_real, eps):
    y = _bn(pre_ref[...], sum_ref[...], sq_ref[...], g_ref[...], b_ref[...],
            m_real, eps)
    out_ref[...] = jnp.maximum(y, 0.0).astype(out_ref.dtype)


def _bn_add_relu_kernel(pre_ref, sum_ref, sq_ref, g_ref, b_ref, short_ref,
                        out_ref, *, m_real, eps):
    """Identity shortcut: out = ReLU(BN2(conv2) + x)."""
    y = _bn(pre_ref[...], sum_ref[...], sq_ref[...], g_ref[...], b_ref[...],
            m_real, eps)
    out_ref[...] = jnp.maximum(
        y + short_ref[...].astype(jnp.float32), 0.0).astype(out_ref.dtype)


def _bn_bn_add_relu_kernel(pre_ref, sum_ref, sq_ref, g_ref, b_ref,
                           spre_ref, ssum_ref, ssq_ref, sg_ref, sb_ref,
                           out_ref, *, m_real, eps):
    """Downsample shortcut: out = ReLU(BN2(conv2) + BNd(conv1x1))."""
    y = _bn(pre_ref[...], sum_ref[...], sq_ref[...], g_ref[...], b_ref[...],
            m_real, eps)
    sc = _bn(spre_ref[...], ssum_ref[...], ssq_ref[...], sg_ref[...], sb_ref[...],
             m_real, eps)
    out_ref[...] = jnp.maximum(y + sc, 0.0).astype(out_ref.dtype)


# ---------------------------------------------------------------------------
# pallas_call wrappers
# ---------------------------------------------------------------------------
def _conv_stats(patches, weights, tile_m):
    Mp, Kp = patches.shape
    Cp = weights.shape[1]
    grid = (Mp // tile_m,)
    tile_bytes = tile_m * Kp * 2 + Kp * Cp * 2 + tile_m * Cp * 4 + 2 * Cp * 4
    return pl.pallas_call(
        _conv_stats_kernel,
        grid=grid,
        in_specs=[pl.BlockSpec((tile_m, Kp), lambda i: (i, 0)),
                  pl.BlockSpec((Kp, Cp), lambda i: (0, 0))],
        out_specs=[pl.BlockSpec((tile_m, Cp), lambda i: (i, 0)),
                   pl.BlockSpec((1, Cp), lambda i: (0, 0)),
                   pl.BlockSpec((1, Cp), lambda i: (0, 0))],
        out_shape=[jax.ShapeDtypeStruct((Mp, Cp), jnp.float32),
                   jax.ShapeDtypeStruct((1, Cp), jnp.float32),
                   jax.ShapeDtypeStruct((1, Cp), jnp.float32)],
        compiler_params=_cparams(("arbitrary",), tile_bytes),
    )(patches, weights)


def _bn_relu(pre, s, q, g, b, *, tile_m, m_real, out_dtype, cp):
    """BN1 + ReLU on the main branch (block column 0 of possibly-fused arrays)."""
    Mp = pre.shape[0]
    grid = (Mp // tile_m,)
    tile_bytes = tile_m * cp * (4 + jnp.dtype(out_dtype).itemsize) + 4 * cp * 4
    row = pl.BlockSpec((tile_m, cp), lambda i: (i, 0))
    vec = pl.BlockSpec((1, cp), lambda i: (0, 0))
    return pl.pallas_call(
        functools.partial(_bn_relu_kernel, m_real=float(m_real), eps=EPS),
        grid=grid,
        in_specs=[row, vec, vec, vec, vec],
        out_specs=pl.BlockSpec((tile_m, cp), lambda i: (i, 0)),
        out_shape=jax.ShapeDtypeStruct((Mp, cp), out_dtype),
        compiler_params=_cparams(("parallel",), tile_bytes),
    )(pre, s, q, g, b)


def _finalize_identity(pre2, s2, q2, g2, b2, short, *, tile_m, m_real, cp):
    Mp = pre2.shape[0]
    grid = (Mp // tile_m,)
    tile_bytes = 3 * tile_m * cp * 4 + 4 * cp * 4
    row = pl.BlockSpec((tile_m, cp), lambda i: (i, 0))
    vec = pl.BlockSpec((1, cp), lambda i: (0, 0))
    return pl.pallas_call(
        functools.partial(_bn_add_relu_kernel, m_real=float(m_real), eps=EPS),
        grid=grid,
        in_specs=[row, vec, vec, vec, vec, row],
        out_specs=pl.BlockSpec((tile_m, cp), lambda i: (i, 0)),
        out_shape=jax.ShapeDtypeStruct((Mp, cp), jnp.float32),
        compiler_params=_cparams(("parallel",), tile_bytes),
    )(pre2, s2, q2, g2, b2, short)


def _finalize_downsample(pre2, s2, q2, g2, b2, pre_f, s_f, q_f, gd, bd,
                         *, tile_m, m_real, cp):
    """Main branch from (Mp, cp) arrays; shortcut branch read from block
    column 1 of the fused conv1/conv1x1 outputs (no XLA slice copies)."""
    Mp = pre2.shape[0]
    grid = (Mp // tile_m,)
    tile_bytes = 3 * tile_m * cp * 4 + 8 * cp * 4
    row0 = pl.BlockSpec((tile_m, cp), lambda i: (i, 0))
    row1 = pl.BlockSpec((tile_m, cp), lambda i: (i, 1))
    vec0 = pl.BlockSpec((1, cp), lambda i: (0, 0))
    vec1 = pl.BlockSpec((1, cp), lambda i: (0, 1))
    return pl.pallas_call(
        functools.partial(_bn_bn_add_relu_kernel, m_real=float(m_real), eps=EPS),
        grid=grid,
        in_specs=[row0, vec0, vec0, vec0, vec0,     # main: pre2, s2, q2, g2, b2
                  row1, vec1, vec1, vec0, vec0],    # shortcut from fused arrays
        out_specs=pl.BlockSpec((tile_m, cp), lambda i: (i, 0)),
        out_shape=jax.ShapeDtypeStruct((Mp, cp), jnp.float32),
        compiler_params=_cparams(("parallel",), tile_bytes),
    )(pre2, s2, q2, g2, b2, pre_f, s_f, q_f, gd, bd)


# ---------------------------------------------------------------------------
# Glue: im2col / weight reordering (plain JAX)
# ---------------------------------------------------------------------------
def _im2col_flat(xpad, ksize, stride, Ho, Wo):
    """(N, Hp, Wp, C) -> (N*Ho*Wo, ksize*ksize*C), tap-major / channel-minor."""
    C = xpad.shape[-1]
    taps = []
    for kh in range(ksize):
        for kw in range(ksize):
            s = xpad[:, kh:kh + stride * Ho:stride, kw:kw + stride * Wo:stride, :]
            taps.append(s.reshape(-1, C))
    return jnp.concatenate(taps, axis=-1)


def _reorder_w_flat(w):
    """PyTorch (Cout, Cin, KH, KW) -> (KH*KW*Cin, Cout); row = kh*KW*Cin + kw*Cin + cin."""
    return jnp.transpose(w, (2, 3, 1, 0)).reshape(-1, w.shape[0])


# ---------------------------------------------------------------------------
# ResidualBlock forward
# ---------------------------------------------------------------------------
def residual_block_forward(x_nchw, params, first_stride, *, tile_m=512):
    N, Cin, H, W = x_nchw.shape
    Cout = params["w1"].shape[0]
    Ho, Wo = H // first_stride, W // first_stride
    M = N * Ho * Wo

    tile_m = min(tile_m, _round_up(M, 8))
    Mp = _round_up(M, tile_m)
    Cp = _round_up(Cout, LANE)
    downsample = first_stride > 1

    x = jnp.transpose(x_nchw, (0, 2, 3, 1)).astype(jnp.float32)      # NHWC

    # ---- conv1 (3x3, stride=first_stride, pad=1), fused with the 1x1
    #      stride-s downsample conv when present: one MXU matmul ----
    Kp1 = _round_up(9 * Cin, LANE)
    xpad = jnp.pad(x, ((0, 0), (1, 1), (1, 1), (0, 0)))
    p1 = _pad2(_im2col_flat(xpad, 3, first_stride, Ho, Wo).astype(jnp.bfloat16),
               Mp, Kp1)
    w_main = _pad2(_reorder_w_flat(params["w1"]).astype(jnp.bfloat16), Kp1, Cp)
    if downsample:
        # Center tap (kh=kw=1, tap index 4) of the padded stride-s 3x3 patch is
        # exactly x at the strided positions, i.e. the 1x1 conv's input.
        wd = jnp.transpose(params["wd"][:, :, 0, 0], (1, 0))          # (Cin, Cout)
        wd_rows = jnp.zeros((9 * Cin, Cout), jnp.float32)
        wd_rows = wd_rows.at[4 * Cin:5 * Cin, :].set(wd)
        w_short = _pad2(wd_rows.astype(jnp.bfloat16), Kp1, Cp)
        w1 = jnp.concatenate([w_main, w_short], axis=1)               # (Kp1, 2*Cp)
    else:
        w1 = w_main

    pre1, sum1, sq1 = _conv_stats(p1, w1, tile_m)
    g1 = _pad2(params["g1"].reshape(1, -1), 1, Cp)
    b1 = _pad2(params["b1"].reshape(1, -1), 1, Cp)
    h1 = _bn_relu(pre1, sum1, sq1, g1, b1, tile_m=tile_m, m_real=M,
                  out_dtype=jnp.bfloat16, cp=Cp)                      # (Mp, Cp)

    # ---- conv2 (3x3, stride=1, pad=1) + BN2 stats ----
    Kp2 = _round_up(9 * Cout, LANE)
    h1n = h1[:M, :Cout].reshape(N, Ho, Wo, Cout)
    h1pad = jnp.pad(h1n, ((0, 0), (1, 1), (1, 1), (0, 0)))
    p2 = _pad2(_im2col_flat(h1pad, 3, 1, Ho, Wo), Mp, Kp2)            # bf16
    w2 = _pad2(_reorder_w_flat(params["w2"]).astype(jnp.bfloat16), Kp2, Cp)
    pre2, sum2, sq2 = _conv_stats(p2, w2, tile_m)
    g2 = _pad2(params["g2"].reshape(1, -1), 1, Cp)
    b2 = _pad2(params["b2"].reshape(1, -1), 1, Cp)

    # ---- shortcut + add + ReLU ----
    if downsample:
        gd = _pad2(params["gd"].reshape(1, -1), 1, Cp)
        bd = _pad2(params["bd"].reshape(1, -1), 1, Cp)
        out = _finalize_downsample(pre2, sum2, sq2, g2, b2,
                                   pre1, sum1, sq1, gd, bd,
                                   tile_m=tile_m, m_real=M, cp=Cp)
    else:
        assert Cin == Cout, "identity shortcut requires in_feats == out_feats"
        short = _pad2(x.reshape(M, Cin), Mp, Cp)                      # f32
        out = _finalize_identity(pre2, sum2, sq2, g2, b2, short,
                                 tile_m=tile_m, m_real=M, cp=Cp)

    out = out[:M, :Cout].reshape(N, Ho, Wo, Cout)
    return jnp.transpose(out, (0, 3, 1, 2))                          # NCHW


# ---------------------------------------------------------------------------
# Pure-JAX reference (mirrors the PyTorch module, training-mode BN)
# ---------------------------------------------------------------------------
def _reference_forward(x, params, first_stride, eps=EPS):
    def conv(x, w, stride, pad):
        return jax.lax.conv_general_dilated(
            x, w, (stride, stride), [(pad, pad), (pad, pad)],
            dimension_numbers=("NCHW", "OIHW", "NCHW"))

    def bn(x, gamma, beta):
        mean = x.mean(axis=(0, 2, 3), keepdims=True)
        var = ((x - mean) ** 2).mean(axis=(0, 2, 3), keepdims=True)
        xn = (x - mean) / jnp.sqrt(var + eps)
        return xn * gamma[None, :, None, None] + beta[None, :, None, None]

    h = conv(x, params["w1"], first_stride, 1)
    h = jnp.maximum(bn(h, params["g1"], params["b1"]), 0.0)
    h = conv(h, params["w2"], 1, 1)
    h = bn(h, params["g2"], params["b2"])
    if first_stride > 1:
        s = conv(x, params["wd"], first_stride, 0)
        s = bn(s, params["gd"], params["bd"])
    else:
        s = x
    return jnp.maximum(h + s, 0.0)


# ---------------------------------------------------------------------------
def _make_params(key, in_feats, out_feats, first_stride):
    ks = jax.random.split(key, 8)
    p = {
        "w1": 0.2 * jax.random.normal(ks[0], (out_feats, in_feats, 3, 3), jnp.float32),
        "g1": 1.0 + 0.1 * jax.random.normal(ks[1], (out_feats,), jnp.float32),
        "b1": 0.1 * jax.random.normal(ks[2], (out_feats,), jnp.float32),
        "w2": 0.2 * jax.random.normal(ks[3], (out_feats, out_feats, 3, 3), jnp.float32),
        "g2": 1.0 + 0.1 * jax.random.normal(ks[4], (out_feats,), jnp.float32),
        "b2": 0.1 * jax.random.normal(ks[5], (out_feats,), jnp.float32),
    }
    if first_stride > 1:
        p["wd"] = 0.2 * jax.random.normal(ks[6], (out_feats, in_feats, 1, 1), jnp.float32)
        p["gd"] = 1.0 + 0.1 * jax.random.normal(ks[7], (out_feats,), jnp.float32)
        p["bd"] = 0.1 * jax.random.normal(ks[7], (out_feats,), jnp.float32)
    return p


if __name__ == "__main__":
    key = jax.random.PRNGKey(0)

    # --- case 1: downsampling block (first_stride=2, in=4 -> out=8) ---
    k_x, k_p = jax.random.split(key)
    x = jax.random.normal(k_x, (2, 4, 16, 16), jnp.float32)
    params = _make_params(k_p, in_feats=4, out_feats=8, first_stride=2)
    out = jax.block_until_ready(residual_block_forward(x, params, first_stride=2))
    assert out.shape == (2, 8, 8, 8), out.shape
    ref = _reference_forward(x, params, 2)
    np.testing.assert_allclose(np.asarray(out), np.asarray(ref), atol=3e-2, rtol=3e-2)

    # --- case 2: identity shortcut (first_stride=1, in=out=4) ---
    k_x2, k_p2 = jax.random.split(jax.random.PRNGKey(1))
    x2 = jax.random.normal(k_x2, (2, 4, 16, 16), jnp.float32)
    params2 = _make_params(k_p2, in_feats=4, out_feats=4, first_stride=1)
    out2 = jax.block_until_ready(residual_block_forward(x2, params2, first_stride=1))
    assert out2.shape == (2, 4, 16, 16), out2.shape
    ref2 = _reference_forward(x2, params2, 1)
    np.testing.assert_allclose(np.asarray(out2), np.asarray(ref2), atol=3e-2, rtol=3e-2)

    print("KERNEL_OK")
</pallas_src>

<mosaic_0001>
module attributes {stable_mosaic.version = 11 : i64} {
  func.func @_conv_stats_kernel(%arg0: i32, %arg1: memref<128x128xbf16, #tpu.memory_space<vmem>>, %arg2: memref<128x256xbf16, #tpu.memory_space<vmem>>, %arg3: memref<128x256xf32, #tpu.memory_space<vmem>>, %arg4: memref<1x256xf32, #tpu.memory_space<vmem>>, %arg5: memref<1x256xf32, #tpu.memory_space<vmem>>) attributes {dimension_semantics = [#tpu.dimension_semantics<arbitrary>], iteration_bounds = array<i64: 1>, scalar_prefetch = 0 : i64, scratch_operands = 0 : i64, tpu.core_type = #tpu.core_type<tc>, window_params = [{transform_indices = @transform_0, window_bounds = array<i64: 128, 128>}, {pipeline_mode = #tpu.pipeline_mode<synchronous>, transform_indices = @transform_1, window_bounds = array<i64: 128, 256>}, {transform_indices = @transform_2, window_bounds = array<i64: 128, 256>}, {pipeline_mode = #tpu.pipeline_mode<synchronous>, transform_indices = @transform_3, window_bounds = array<i64: 1, 256>}, {pipeline_mode = #tpu.pipeline_mode<synchronous>, transform_indices = @transform_4, window_bounds = array<i64: 1, 256>}]} {
    %c0 = arith.constant 0 : index
    %c0_0 = arith.constant 0 : index
    %0 = vector.load %arg1[%c0, %c0_0] : memref<128x128xbf16, #tpu.memory_space<vmem>>, vector<128x128xbf16>
    %c0_1 = arith.constant 0 : index
    %c0_2 = arith.constant 0 : index
    %1 = vector.load %arg2[%c0_1, %c0_2] : memref<128x256xbf16, #tpu.memory_space<vmem>>, vector<128x256xbf16>
    %cst = arith.constant dense<0.000000e+00> : vector<128x256xf32>
    %2 = tpu.matmul %0, %1, %cst {dimension_numbers = #tpu.dot_dimension_numbers<[1], [0], [0], [1], [0, 0, 1, 1], [], []>} : vector<128x128xbf16>, vector<128x256xbf16>, vector<128x256xf32> -> vector<128x256xf32>
    %c0_3 = arith.constant 0 : index
    %c0_4 = arith.constant 0 : index
    %3 = vector.load %arg3[%c0_3, %c0_4] : memref<128x256xf32, #tpu.memory_space<vmem>>, vector<128x256xf32>
    tpu.vector_store %arg3[%c0_3, %c0_4], %2 {strides = array<i32>} : memref<128x256xf32, #tpu.memory_space<vmem>>, vector<128x256xf32>,
    %c0_i32 = arith.constant 0 : i32
    %4 = arith.cmpi eq, %arg0, %c0_i32 : i32
    %5 = arith.extui %4 : i1 to i32
    %c0_i32_5 = arith.constant 0 : i32
    %6 = arith.cmpi ne, %5, %c0_i32_5 : i32
    scf.if %6 {
      %cst_16 = arith.constant 0.000000e+00 : f32
      %18 = vector.broadcast %cst_16 : f32 to vector<1x256xf32>
      %c0_17 = arith.constant 0 : index
      %c0_18 = arith.constant 0 : index
      %19 = vector.load %arg4[%c0_17, %c0_18] : memref<1x256xf32, #tpu.memory_space<vmem>>, vector<1x256xf32>
      tpu.vector_store %arg4[%c0_17, %c0_18], %18 {strides = array<i32>} : memref<1x256xf32, #tpu.memory_space<vmem>>, vector<1x256xf32>,
      %cst_19 = arith.constant 0.000000e+00 : f32
      %20 = vector.broadcast %cst_19 : f32 to vector<1x256xf32>
      %c0_20 = arith.constant 0 : index
      %c0_21 = arith.constant 0 : index
      %21 = vector.load %arg5[%c0_20, %c0_21] : memref<1x256xf32, #tpu.memory_space<vmem>>, vector<1x256xf32>
      tpu.vector_store %arg5[%c0_20, %c0_21], %20 {strides = array<i32>} : memref<1x256xf32, #tpu.memory_space<vmem>>, vector<1x256xf32>,
    } else {
    }
    %c0_6 = arith.constant 0 : index
    %c0_7 = arith.constant 0 : index
    %7 = vector.load %arg4[%c0_6, %c0_7] : memref<1x256xf32, #tpu.memory_space<vmem>>, vector<1x256xf32>
    %cst_8 = arith.constant dense<0.000000e+00> : vector<256xf32>
    %8 = vector.multi_reduction <add>, %2, %cst_8 [0] : vector<128x256xf32> to vector<256xf32>
    %9 = vector.shape_cast %8 : vector<256xf32> to vector<1x256xf32>
    %10 = arith.addf %7, %9 : vector<1x256xf32>
    %c0_9 = arith.constant 0 : index
    %c0_10 = arith.constant 0 : index
    %11 = vector.load %arg4[%c0_9, %c0_10] : memref<1x256xf32, #tpu.memory_space<vmem>>, vector<1x256xf32>
    tpu.vector_store %arg4[%c0_9, %c0_10], %10 {strides = array<i32>} : memref<1x256xf32, #tpu.memory_space<vmem>>, vector<1x256xf32>,
    %c0_11 = arith.constant 0 : index
    %c0_12 = arith.constant 0 : index
    %12 = vector.load %arg5[%c0_11, %c0_12] : memref<1x256xf32, #tpu.memory_space<vmem>>, vector<1x256xf32>
    %13 = arith.mulf %2, %2 : vector<128x256xf32>
    %cst_13 = arith.constant dense<0.000000e+00> : vector<256xf32>
    %14 = vector.multi_reduction <add>, %13, %cst_13 [0] : vector<128x256xf32> to vector<256xf32>
    %15 = vector.shape_cast %14 : vector<256xf32> to vector<1x256xf32>
    %16 = arith.addf %12, %15 : vector<1x256xf32>
    %c0_14 = arith.constant 0 : index
    %c0_15 = arith.constant 0 : index
    %17 = vector.load %arg5[%c0_14, %c0_15] : memref<1x256xf32, #tpu.memory_space<vmem>>, vector<1x256xf32>
    tpu.vector_store %arg5[%c0_14, %c0_15], %16 {strides = array<i32>} : memref<1x256xf32, #tpu.memory_space<vmem>>, vector<1x256xf32>,
    return
  }
  func.func @transform_0(%arg0: i32) -> (i32, i32) {
    %c0_i32 = arith.constant 0 : i32
    %c0_i32_0 = arith.constant 0 : i32
    return %arg0, %c0_i32 : i32, i32
  }
  func.func @transform_1(%arg0: i32) -> (i32, i32) {
    %c0_i32 = arith.constant 0 : i32
    %c0_i32_0 = arith.constant 0 : i32
    %c0_i32_1 = arith.constant 0 : i32
    return %c0_i32, %c0_i32_0 : i32, i32
  }
  func.func @transform_2(%arg0: i32) -> (i32, i32) {
    %c0_i32 = arith.constant 0 : i32
    %c0_i32_0 = arith.constant 0 : i32
    return %arg0, %c0_i32 : i32, i32
  }
  func.func @transform_3(%arg0: i32) -> (i32, i32) {
    %c0_i32 = arith.constant 0 : i32
    %c0_i32_0 = arith.constant 0 : i32
    %c0_i32_1 = arith.constant 0 : i32
    return %c0_i32, %c0_i32_0 : i32, i32
  }
  func.func @transform_4(%arg0: i32) -> (i32, i32) {
    %c0_i32 = arith.constant 0 : i32
    %c0_i32_0 = arith.constant 0 : i32
    %c0_i32_1 = arith.constant 0 : i32
    return %c0_i32, %c0_i32_0 : i32, i32
  }
}

</mosaic_0001>

<llo_original>
// kernel: tpu_custom_call.1
$region0: #{tpu_custom_call.1}
  #allocation0 [shape = 'u32[]', space=smem, size = 0x4, offset = 0x4, fixed_abs, tag = 'smem constant byte address 0x4 - core index']
  #allocation1 [shape = 'u32[144,128]{1,0:T(1,128)}', space=vmem, size = 0x12000, scoped, tag = 'internal scratch']
  %s0 = inlined_call_operand.hbm [shape: bf16[128,128], index: 0, kind: input, shape index: {}]
  %s1 = inlined_call_operand.hbm [shape: bf16[128,256], index: 1, kind: input, shape index: {}]
  %s2 = inlined_call_operand.hbm [shape: f32[128,256], index: 2, kind: output, shape index: {0}]
  %s3 = inlined_call_operand.hbm [shape: f32[1,256], index: 3, kind: output, shape index: {1}]
  %s4 = inlined_call_operand.hbm [shape: f32[1,256], index: 4, kind: output, shape index: {2}]
  %5 = xla_tuple %s2, %s3, %s4
  %s6 = sld [smem:[#allocation0]]
  $region46: #{tpu_custom_call.1} parent=0
    _
  %s8 = ssub.s32 1, %s6
  %s9 = scalar_select 0, %s8, %s6
  $region1: #{tpu_custom_call.1} parent=0
    #allocation2 [shape = 'u8[32768]{0}', space=vmem, size = 0x8000, scoped, tag = 'input window, operand 0, single buffered']
    #allocation3 [shape = 's32[1]{0}', space=sflag, size = 0x4, scoped, tag = 'scoped memory for tpu_custom_call.1']
    #allocation4 [shape = 's32[1]{0}', space=sflag, size = 0x4, scoped, tag = 'scoped memory for tpu_custom_call.1']
    #allocation5 [shape = 'u8[65536]{0}', space=vmem, size = 0x10000, scoped, tag = 'input window, operand 1, single buffered']
    #allocation6 [shape = 's32[1]{0}', space=sflag, size = 0x4, scoped, tag = 'scoped memory for tpu_custom_call.1']
    #allocation7 [shape = 'u8[131072]{0}', space=vmem, size = 0x20000, scoped, tag = 'output window, operand 0, single buffered']
    #allocation8 [shape = 'u8[1024]{0}', space=vmem, size = 0x400, scoped, tag = 'output window, operand 1, single buffered']
    #allocation9 [shape = 's32[1]{0}', space=sflag, size = 0x4, scoped, tag = 'scoped memory for tpu_custom_call.1']
    #allocation10 [shape = 'u8[1024]{0}', space=vmem, size = 0x400, scoped, tag = 'output window, operand 2, single buffered']
    %10 = vsyncpa [#allocation3], 0
    %11 = vsyncpa [#allocation6], 0
    %12 = vsyncpa [#allocation4], 0
    %13 = vsyncpa [#allocation9], 0
    // Predicated region
    $region2: #{tpu_custom_call.1} parent=1 // pred_check
      _
    $region3: #{tpu_custom_call.1} parent=1 // pred_check_branch
      %15 = sbr.rel (0) target = $region5
    $region4: #{tpu_custom_call.1} parent=1 // pred_region
      %s17 = ssub.s32 1024, 1024
      %18 = vsyncadd [#allocation3], %s17
      %s19 = sshll.u32 [#allocation2], 4
      %s20 = int_to_ptr.vmem [resolvable:$true] %s19
      %25 = dma.hbm_to_vmem [thread:$0]  %s0, 1024, %s20, [#allocation3], 64, 64, 4
    $region5: #{tpu_custom_call.1} parent=1 // pred_fallthru
      _
    // Predicated region
    $region6: #{tpu_custom_call.1} parent=1 // pred_check
      _
    $region7: #{tpu_custom_call.1} parent=1 // pred_check_branch
      %27 = sbr.rel (0) target = $region9
    $region8: #{tpu_custom_call.1} parent=1 // pred_region
      %s29 = ssub.s32 2048, 2048
      %30 = vsyncadd [#allocation6], %s29
      %s31 = sshll.u32 [#allocation5], 4
      %s32 = int_to_ptr.vmem [resolvable:$true] %s31
      %37 = dma.hbm_to_vmem [thread:$0]  %s1, 2048, %s32, [#allocation6], 128, 128, 8
    $region9: #{tpu_custom_call.1} parent=1 // pred_fallthru
      _
    // Predicated region
    $region10: #{tpu_custom_call.1} parent=1 // pred_check
      _
    $region11: #{tpu_custom_call.1} parent=1 // pred_check_branch
      %39 = sbr.rel (0) target = $region13
    $region12: #{tpu_custom_call.1} parent=1 // pred_region
      %40 = dma.done [#allocation3], 1024
    $region13: #{tpu_custom_call.1} parent=1 // pred_fallthru
      _
    // Predicated region
    $region14: #{tpu_custom_call.1} parent=1 // pred_check
      _
    $region15: #{tpu_custom_call.1} parent=1 // pred_check_branch
      %42 = sbr.rel (0) target = $region17
    $region16: #{tpu_custom_call.1} parent=1 // pred_region
      %43 = dma.done [#allocation6], 2048
    $region17: #{tpu_custom_call.1} parent=1 // pred_fallthru
      _
    %v45 = vld [vmem:[#allocation2] sm:$0xf]
    %v46 = vld [vmem:[#allocation2 + $0x4] sm:$0xf]
    %v47 = vld [vmem:[#allocation2 + $0x8] sm:$0xf]
    %v48 = vld [vmem:[#allocation2 + $0xc] sm:$0xf]
    %v49 = vld [vmem:[#allocation2 + $0x10] sm:$0xf]
    %v50 = vld [vmem:[#allocation2 + $0x14] sm:$0xf]
    %v51 = vld [vmem:[#allocation2 + $0x18] sm:$0xf]
    %v52 = vld [vmem:[#allocation2 + $0x1c] sm:$0xf]
    %v53 = vld [vmem:[#allocation2 + $0x20] sm:$0xf]
    %v54 = vld [vmem:[#allocation2 + $0x24] sm:$0xf]
    %v55 = vld [vmem:[#allocation2 + $0x28] sm:$0xf]
    %v56 = vld [vmem:[#allocation2 + $0x2c] sm:$0xf]
    %v57 = vld [vmem:[#allocation2 + $0x30] sm:$0xf]
    %v58 = vld [vmem:[#allocation2 + $0x34] sm:$0xf]
    %v59 = vld [vmem:[#allocation2 + $0x38] sm:$0xf]
    %v60 = vld [vmem:[#allocation2 + $0x3c] sm:$0xf]
    %v61 = vld [vmem:[#allocation5] sm:$0xff]
    %v62 = vld [vmem:[#allocation5 + $0x8] sm:$0xff]
    %v63 = vld [vmem:[#allocation5 + $0x10] sm:$0xff]
    %v64 = vld [vmem:[#allocation5 + $0x18] sm:$0xff]
    %v65 = vld [vmem:[#allocation5 + $0x20] sm:$0xff]
    %v66 = vld [vmem:[#allocation5 + $0x28] sm:$0xff]
    %v67 = vld [vmem:[#allocation5 + $0x30] sm:$0xff]
    %v68 = vld [vmem:[#allocation5 + $0x38] sm:$0xff]
    %v69 = vld [vmem:[#allocation5 + $0x40] sm:$0xff]
    %v70 = vld [vmem:[#allocation5 + $0x48] sm:$0xff]
    %v71 = vld [vmem:[#allocation5 + $0x50] sm:$0xff]
    %v72 = vld [vmem:[#allocation5 + $0x58] sm:$0xff]
    %v73 = vld [vmem:[#allocation5 + $0x60] sm:$0xff]
    %v74 = vld [vmem:[#allocation5 + $0x68] sm:$0xff]
    %v75 = vld [vmem:[#allocation5 + $0x70] sm:$0xff]
    %v76 = vld [vmem:[#allocation5 + $0x78] sm:$0xff]
    %v93 = vunpack.c.l.b16 %v45
    %v94 = vunpack.c.l.b16 %v46
    %v95 = vunpack.c.l.b16 %v47
    %v96 = vunpack.c.l.b16 %v48
    %v97 = vunpack.c.l.b16 %v49
    %v98 = vunpack.c.l.b16 %v50
    %v99 = vunpack.c.l.b16 %v51
    %v100 = vunpack.c.l.b16 %v52
    %v101 = vunpack.c.l.b16 %v53
    %v102 = vunpack.c.l.b16 %v54
    %v103 = vunpack.c.l.b16 %v55
    %v104 = vunpack.c.l.b16 %v56
    %v105 = vunpack.c.l.b16 %v57
    %v106 = vunpack.c.l.b16 %v58
    %v107 = vunpack.c.l.b16 %v59
    %v108 = vunpack.c.l.b16 %v60
    %v109 = vpack.c.b16 %v94, %v93
    %v110 = vpack.c.b16 %v96, %v95
    %v111 = vpack.c.b16 %v98, %v97
    %v112 = vpack.c.b16 %v100, %v99
    %v113 = vpack.c.b16 %v102, %v101
    %v114 = vpack.c.b16 %v104, %v103
    %v115 = vpack.c.b16 %v106, %v105
    %v116 = vpack.c.b16 %v108, %v107
    %v141 = vunpack.c.l.b16 %v61
    %v142 = vunpack.c.h.b16 %v61
    %v143 = vunpack.c.l.b16 %v62
    %v144 = vunpack.c.h.b16 %v62
    %v145 = vunpack.c.l.b16 %v63
    %v146 = vunpack.c.h.b16 %v63
    %v147 = vunpack.c.l.b16 %v64
    %v148 = vunpack.c.h.b16 %v64
    %v149 = vunpack.c.l.b16 %v65
    %v150 = vunpack.c.h.b16 %v65
    %v151 = vunpack.c.l.b16 %v66
    %v152 = vunpack.c.h.b16 %v66
    %v153 = vunpack.c.l.b16 %v67
    %v154 = vunpack.c.h.b16 %v67
    %v155 = vunpack.c.l.b16 %v68
    %v156 = vunpack.c.h.b16 %v68
    %v157 = vunpack.c.l.b16 %v69
    %v158 = vunpack.c.h.b16 %v69
    %v159 = vunpack.c.l.b16 %v70
    %v160 = vunpack.c.h.b16 %v70
    %v161 = vunpack.c.l.b16 %v71
    %v162 = vunpack.c.h.b16 %v71
    %v163 = vunpack.c.l.b16 %v72
    %v164 = vunpack.c.h.b16 %v72
    %v165 = vunpack.c.l.b16 %v73
    %v166 = vunpack.c.h.b16 %v73
    %v167 = vunpack.c.l.b16 %v74
    %v168 = vunpack.c.h.b16 %v74
    %v169 = vunpack.c.l.b16 %v75
    %v170 = vunpack.c.h.b16 %v75
    %v171 = vunpack.c.l.b16 %v76
    %v172 = vunpack.c.h.b16 %v76
    %v173 = vpack.c.b16 %v143, %v141
    %v174 = vpack.c.b16 %v144, %v142
    %v175 = vpack.c.b16 %v147, %v145
    %v176 = vpack.c.b16 %v148, %v146
    %v177 = vpack.c.b16 %v151, %v149
    %v178 = vpack.c.b16 %v152, %v150
    %v179 = vpack.c.b16 %v155, %v153
    %v180 = vpack.c.b16 %v156, %v154
    %v181 = vpack.c.b16 %v159, %v157
    %v182 = vpack.c.b16 %v160, %v158
    %v183 = vpack.c.b16 %v163, %v161
    %v184 = vpack.c.b16 %v164, %v162
    %v185 = vpack.c.b16 %v167, %v165
    %v186 = vpack.c.b16 %v168, %v166
    %v187 = vpack.c.b16 %v171, %v169
    %v188 = vpack.c.b16 %v172, %v170
    %205 = vmatprep.subr.bf16.mxu0 %v174
    %206 = vmatpush1.bf16.msra.mxu0 %v173
    %207 = vmatprep.subr.bf16.mxu0 %v176
    %208 = vmatpush1.bf16.msra.mxu0 %v175
    %209 = vmatprep.subr.bf16.mxu0 %v178
    %210 = vmatpush1.bf16.msra.mxu0 %v177
    %211 = vmatprep.subr.bf16.mxu0 %v180
    %212 = vmatpush1.bf16.msra.mxu0 %v179
    %213 = vmatprep.subr.bf16.mxu0 %v182
    %214 = vmatpush1.bf16.msra.mxu0 %v181
    %215 = vmatprep.subr.bf16.mxu0 %v184
    %216 = vmatpush1.bf16.msra.mxu0 %v183
    %217 = vmatprep.subr.bf16.mxu0 %v186
    %218 = vmatpush1.bf16.msra.mxu0 %v185
    %219 = vmatprep.subr.bf16.mxu0 %v188
    %220 = vmatpush1.bf16.msra.mxu0 %v187
    %221 = vmatprep.subr.bf16.mxu0 0
    %222 = vmatpush1.bf16.msra.mxu0 0
    %223 = vmatprep.subr.bf16.mxu0 0
    %224 = vmatpush1.bf16.msra.mxu0 0
    %225 = vmatprep.subr.bf16.mxu0 0
    %226 = vmatpush1.bf16.msra.mxu0 0
    %227 = vmatprep.subr.bf16.mxu0 0
    %228 = vmatpush1.bf16.msra.mxu0 0
    %229 = vmatprep.subr.bf16.mxu0 0
    %230 = vmatpush1.bf16.msra.mxu0 0
    %231 = vmatprep.subr.bf16.mxu0 0
    %232 = vmatpush1.bf16.msra.mxu0 0
    %233 = vmatprep.subr.bf16.mxu0 0
    %234 = vmatpush1.bf16.msra.mxu0 0
    %235 = vmatprep.subr.bf16.mxu0 0
    %236 = vmatpush1.bf16.msra.mxu0 0
    %237 = vmatprep.mubr.bf16.mxu0 0
    %238 = vmatmul.mubr.bf16.gmra.mrb[0].mxu0 %v109
    %v239 = vpop.f32.mrb[0].mxu0
    %v240 = vadd.f32 0.0, %v239
    %v241 = vpop.f32.mrb[0].mxu0
    %v242 = vadd.f32 0.0, %v241
    %v243 = vpop.f32.mrb[0].mxu0
    %v244 = vadd.f32 0.0, %v243
    %v245 = vpop.f32.mrb[0].mxu0
    %v246 = vadd.f32 0.0, %v245
    %247 = vmatprep.mubr.bf16.mxu0 0
    %248 = vmatmul.mubr.bf16.gmra.mrb[0].mxu0 %v110
    %v249 = vpop.f32.mrb[0].mxu0
    %v250 = vadd.f32 0.0, %v249
    %v251 = vpop.f32.mrb[0].mxu0
    %v252 = vadd.f32 0.0, %v251
    %v253 = vpop.f32.mrb[0].mxu0
    %v254 = vadd.f32 0.0, %v253
    %v255 = vpop.f32.mrb[0].mxu0
    %v256 = vadd.f32 0.0, %v255
    %257 = vmatprep.mubr.bf16.mxu0 0
    %258 = vmatmul.mubr.bf16.gmra.mrb[0].mxu0 %v111
    %v259 = vpop.f32.mrb[0].mxu0
    %v260 = vadd.f32 0.0, %v259
    %v261 = vpop.f32.mrb[0].mxu0
    %v262 = vadd.f32 0.0, %v261
    %v263 = vpop.f32.mrb[0].mxu0
    %v264 = vadd.f32 0.0, %v263
    %v265 = vpop.f32.mrb[0].mxu0
    %v266 = vadd.f32 0.0, %v265
    %267 = vmatprep.mubr.bf16.mxu0 0
    %268 = vmatmul.mubr.bf16.gmra.mrb[0].mxu0 %v112
    %v269 = vpop.f32.mrb[0].mxu0
    %v270 = vadd.f32 0.0, %v269
    %v271 = vpop.f32.mrb[0].mxu0
    %v272 = vadd.f32 0.0, %v271
    %v273 = vpop.f32.mrb[0].mxu0
    %v274 = vadd.f32 0.0, %v273
    %v275 = vpop.f32.mrb[0].mxu0
    %v276 = vadd.f32 0.0, %v275
    %277 = vmatprep.mubr.bf16.mxu0 0
    %278 = vmatmul.mubr.bf16.gmra.mrb[0].mxu0 %v113
    %v279 = vpop.f32.mrb[0].mxu0
    %v280 = vadd.f32 0.0, %v279
    %v281 = vpop.f32.mrb[0].mxu0
    %v282 = vadd.f32 0.0, %v281
    %v283 = vpop.f32.mrb[0].mxu0
    %v284 = vadd.f32 0.0, %v283
    %v285 = vpop.f32.mrb[0].mxu0
    %v286 = vadd.f32 0.0, %v285
    %287 = vmatprep.mubr.bf16.mxu0 0
    %288 = vmatmul.mubr.bf16.gmra.mrb[0].mxu0 %v114
    %v289 = vpop.f32.mrb[0].mxu0
    %v290 = vadd.f32 0.0, %v289
    %v291 = vpop.f32.mrb[0].mxu0
    %v292 = vadd.f32 0.0, %v291
    %v293 = vpop.f32.mrb[0].mxu0
    %v294 = vadd.f32 0.0, %v293
    %v295 = vpop.f32.mrb[0].mxu0
    %v296 = vadd.f32 0.0, %v295
    %297 = vmatprep.mubr.bf16.mxu0 0
    %298 = vmatmul.mubr.bf16.gmra.mrb[0].mxu0 %v115
    %v299 = vpop.f32.mrb[0].mxu0
    %v300 = vadd.f32 0.0, %v299
    %v301 = vpop.f32.mrb[0].mxu0
    %v302 = vadd.f32 0.0, %v301
    %v303 = vpop.f32.mrb[0].mxu0
    %v304 = vadd.f32 0.0, %v303
    %v305 = vpop.f32.mrb[0].mxu0
    %v306 = vadd.f32 0.0, %v305
    %307 = vmatprep.mubr.bf16.mxu0 0
    %308 = vmatmul.mubr.bf16.gmra.mrb[0].mxu0 %v116
    %v309 = vpop.f32.mrb[0].mxu0
    %v310 = vadd.f32 0.0, %v309
    %v311 = vpop.f32.mrb[0].mxu0
    %v312 = vadd.f32 0.0, %v311
    %v313 = vpop.f32.mrb[0].mxu0
    %v314 = vadd.f32 0.0, %v313
    %v315 = vpop.f32.mrb[0].mxu0
    %v316 = vadd.f32 0.0, %v315
    %317 = vdwg.mxu0
    %318 = vst [vmem:[#allocation7] sm:$0xff] %v240
    %319 = vst [vmem:[#allocation7 + $0x8] sm:$0xff] %v242
    %320 = vst [vmem:[#allocation7 + $0x10] sm:$0xff] %v244
    %321 = vst [vmem:[#allocation7 + $0x18] sm:$0xff] %v246
    %322 = vst [vmem:[#allocation7 + $0x20] sm:$0xff] %v250
    %323 = vst [vmem:[#allocation7 + $0x28] sm:$0xff] %v252
    %324 = vst [vmem:[#allocation7 + $0x30] sm:$0xff] %v254
    %325 = vst [vmem:[#allocation7 + $0x38] sm:$0xff] %v256
    %326 = vst [vmem:[#allocation7 + $0x40] sm:$0xff] %v260
    %327 = vst [vmem:[#allocation7 + $0x48] sm:$0xff] %v262
    %328 = vst [vmem:[#allocation7 + $0x50] sm:$0xff] %v264
    %329 = vst [vmem:[#allocation7 + $0x58] sm:$0xff] %v266
    %330 = vst [vmem:[#allocation7 + $0x60] sm:$0xff] %v270
    %331 = vst [vmem:[#allocation7 + $0x68] sm:$0xff] %v272
    %332 = vst [vmem:[#allocation7 + $0x70] sm:$0xff] %v274
    %333 = vst [vmem:[#allocation7 + $0x78] sm:$0xff] %v276
    %334 = vst [vmem:[#allocation7 + $0x80] sm:$0xff] %v280
    %335 = vst [vmem:[#allocation7 + $0x88] sm:$0xff] %v282
    %336 = vst [vmem:[#allocation7 + $0x90] sm:$0xff] %v284
    %337 = vst [vmem:[#allocation7 + $0x98] sm:$0xff] %v286
    %338 = vst [vmem:[#allocation7 + $0xa0] sm:$0xff] %v290
    %339 = vst [vmem:[#allocation7 + $0xa8] sm:$0xff] %v292
    %340 = vst [vmem:[#allocation7 + $0xb0] sm:$0xff] %v294
    %341 = vst [vmem:[#allocation7 + $0xb8] sm:$0xff] %v296
    %342 = vst [vmem:[#allocation7 + $0xc0] sm:$0xff] %v300
    %343 = vst [vmem:[#allocation7 + $0xc8] sm:$0xff] %v302
    %344 = vst [vmem:[#allocation7 + $0xd0] sm:$0xff] %v304
    %345 = vst [vmem:[#allocation7 + $0xd8] sm:$0xff] %v306
    %346 = vst [vmem:[#allocation7 + $0xe0] sm:$0xff] %v310
    %347 = vst [vmem:[#allocation7 + $0xe8] sm:$0xff] %v312
    %348 = vst [vmem:[#allocation7 + $0xf0] sm:$0xff] %v314
    %349 = vst [vmem:[#allocation7 + $0xf8] sm:$0xff] %v316
    %p350 = scmp.eq.s32.totalorder 0, 0
    // Predicated region
    $region18: #{tpu_custom_call.1} parent=1 // pred_check
      %p351 = pneg %p350
    $region19: #{tpu_custom_call.1} parent=1 // pred_check_branch
      %353 = sbr.rel (%p351) target = $region21
    $region20: #{tpu_custom_call.1} parent=1 // pred_region
      %v354 = vlaneseq
      %vm355 = vcmp.ge.s32.totalorder %v354, 0
      %vm356 = vcmp.lt.s32.totalorder %v354, 256
      %vm357 = vmand %vm355, %vm356
      %358 = vst.msk [vmem:[#allocation8] sm:$0x3] %vm357, 0.0
      %359 = vst.msk [vmem:[#allocation10] sm:$0x3] %vm357, 0.0
    $region21: #{tpu_custom_call.1} parent=1 // pred_fallthru
      _
    %v360 = vld [vmem:[#allocation8] sm:$0x3]
    %v361 = vadd.f32 %v240, %v244
    %v362 = vadd.f32 %v361, %v250
    %v363 = vadd.f32 %v362, %v254
    %v364 = vadd.f32 %v363, %v260
    %v365 = vadd.f32 %v364, %v264
    %v366 = vadd.f32 %v365, %v270
    %v367 = vadd.f32 %v366, %v274
    %v368 = vadd.f32 %v367, %v280
    %v369 = vadd.f32 %v368, %v284
    %v370 = vadd.f32 %v369, %v290
    %v371 = vadd.f32 %v370, %v294
    %v372 = vadd.f32 %v371, %v300
    %v373 = vadd.f32 %v372, %v304
    %v374 = vadd.f32 %v373, %v310
    %v375 = vadd.f32 %v374, %v314
    %v376 = vrot.slane %v375, 4
    %v377 = vadd.f32 %v375, %v376
    %v378 = vrot.slane %v377, 2
    %v379 = vadd.f32 %v377, %v378
    %v380 = vrot.slane %v379, 1
    %v381 = vadd.f32 %v379, %v380
    %v382 = vadd.f32 %v242, %v246
    %v383 = vadd.f32 %v382, %v252
    %v384 = vadd.f32 %v383, %v256
    %v385 = vadd.f32 %v384, %v262
    %v386 = vadd.f32 %v385, %v266
    %v387 = vadd.f32 %v386, %v272
    %v388 = vadd.f32 %v387, %v276
    %v389 = vadd.f32 %v388, %v282
    %v390 = vadd.f32 %v389, %v286
    %v391 = vadd.f32 %v390, %v292
    %v392 = vadd.f32 %v391, %v296
    %v393 = vadd.f32 %v392, %v302
    %v394 = vadd.f32 %v393, %v306
    %v395 = vadd.f32 %v394, %v312
    %v396 = vadd.f32 %v395, %v316
    %v397 = vrot.slane %v396, 4
    %v398 = vadd.f32 %v396, %v397
    %v399 = vrot.slane %v398, 2
    %v400 = vadd.f32 %v398, %v399
    %v401 = vrot.slane %v400, 1
    %v402 = vadd.f32 %v400, %v401
    %v405 = vcombine.low %v381, %v402
    %v407 = vunpack.c.l.s4 1966171168
    %v408 = vunpack.c.0.s8 %v407
    %v409 = vlaneseq
    %v410 = vshrl.u32 %v409, 7
    %v411 = vsub.s32 %v408, %v410
    %v412 = vrot.slane %v405, %v411
    %v414 = vunpack.c.l.s4 1966171168
    %v415 = vunpack.c.0.s8 %v414
    %v416 = vlaneseq
    %v417 = vshrl.u32 %v416, 7
    %v418 = vsub.s32 %v415, %v417
    %v419 = vrot.slane %v412, %v418
    %v421 = vadd.f32 %v360, %v419
    %v422 = vlaneseq
    %vm423 = vcmp.ge.s32.totalorder %v422, 0
    %vm424 = vcmp.lt.s32.totalorder %v422, 256
    %vm425 = vmand %vm423, %vm424
    %426 = vst.msk [vmem:[#allocation8] sm:$0x3] %vm425, %v421
    %v427 = vld [vmem:[#allocation10] sm:$0x3]
    %v428 = vmul.f32 %v240, %v240
    %v429 = vmul.f32 %v242, %v242
    %v430 = vmul.f32 %v244, %v244
    %v431 = vmul.f32 %v246, %v246
    %v432 = vmul.f32 %v250, %v250
    %v433 = vmul.f32 %v252, %v252
    %v434 = vmul.f32 %v254, %v254
    %v435 = vmul.f32 %v256, %v256
    %v436 = vmul.f32 %v260, %v260
    %v437 = vmul.f32 %v262, %v262
    %v438 = vmul.f32 %v264, %v264
    %v439 = vmul.f32 %v266, %v266
    %v440 = vmul.f32 %v270, %v270
    %v441 = vmul.f32 %v272, %v272
    %v442 = vmul.f32 %v274, %v274
    %v443 = vmul.f32 %v276, %v276
    %v444 = vmul.f32 %v280, %v280
    %v445 = vmul.f32 %v282, %v282
    %v446 = vmul.f32 %v284, %v284
    %v447 = vmul.f32 %v286, %v286
    %v448 = vmul.f32 %v290, %v290
    %v449 = vmul.f32 %v292, %v292
    %v450 = vmul.f32 %v294, %v294
    %v451 = vmul.f32 %v296, %v296
    %v452 = vmul.f32 %v300, %v300
    %v453 = vmul.f32 %v302, %v302
    %v454 = vmul.f32 %v304, %v304
    %v455 = vmul.f32 %v306, %v306
    %v456 = vmul.f32 %v310, %v310
    %v457 = vmul.f32 %v312, %v312
    %v458 = vmul.f32 %v314, %v314
    %v459 = vmul.f32 %v316, %v316
    %v460 = vadd.f32 %v428, %v430
    %v461 = vadd.f32 %v460, %v432
    %v462 = vadd.f32 %v461, %v434
    %v463 = vadd.f32 %v462, %v436
    %v464 = vadd.f32 %v463, %v438
    %v465 = vadd.f32 %v464, %v440
    %v466 = vadd.f32 %v465, %v442
    %v467 = vadd.f32 %v466, %v444
    %v468 = vadd.f32 %v467, %v446
    %v469 = vadd.f32 %v468, %v448
    %v470 = vadd.f32 %v469, %v450
    %v471 = vadd.f32 %v470, %v452
    %v472 = vadd.f32 %v471, %v454
    %v473 = vadd.f32 %v472, %v456
    %v474 = vadd.f32 %v473, %v458
    %v475 = vrot.slane %v474, 4
    %v476 = vadd.f32 %v474, %v475
    %v477 = vrot.slane %v476, 2
    %v478 = vadd.f32 %v476, %v477
    %v479 = vrot.slane %v478, 1
    %v480 = vadd.f32 %v478, %v479
    %v481 = vadd.f32 %v429, %v431
    %v482 = vadd.f32 %v481, %v433
    %v483 = vadd.f32 %v482, %v435
    %v484 = vadd.f32 %v483, %v437
    %v485 = vadd.f32 %v484, %v439
    %v486 = vadd.f32 %v485, %v441
    %v487 = vadd.f32 %v486, %v443
    %v488 = vadd.f32 %v487, %v445
    %v489 = vadd.f32 %v488, %v447
    %v490 = vadd.f32 %v489, %v449
    %v491 = vadd.f32 %v490, %v451
    %v492 = vadd.f32 %v491, %v453
    %v493 = vadd.f32 %v492, %v455
    %v494 = vadd.f32 %v493, %v457
    %v495 = vadd.f32 %v494, %v459
    %v496 = vrot.slane %v495, 4
    %v497 = vadd.f32 %v495, %v496
    %v498 = vrot.slane %v497, 2
    %v499 = vadd.f32 %v497, %v498
    %v500 = vrot.slane %v499, 1
    %v501 = vadd.f32 %v499, %v500
    %v504 = vcombine.low %v480, %v501
    %v506 = vunpack.c.l.s4 1966171168
    %v507 = vunpack.c.0.s8 %v506
    %v508 = vlaneseq
    %v509 = vshrl.u32 %v508, 7
    %v510 = vsub.s32 %v507, %v509
    %v511 = vrot.slane %v504, %v510
    %v513 = vunpack.c.l.s4 1966171168
    %v514 = vunpack.c.0.s8 %v513
    %v515 = vlaneseq
    %v516 = vshrl.u32 %v515, 7
    %v517 = vsub.s32 %v514, %v516
    %v518 = vrot.slane %v511, %v517
    %v520 = vadd.f32 %v427, %v518
    %521 = vst.msk [vmem:[#allocation10] sm:$0x3] %vm425, %v520
    // Predicated region
    $region22: #{tpu_custom_call.1} parent=1 // pred_check
      _
    $region23: #{tpu_custom_call.1} parent=1 // pred_check_branch
      %523 = sbr.rel (0) target = $region25
    $region24: #{tpu_custom_call.1} parent=1 // pred_region
      %s525 = ssub.s32 4096, 4096
      %526 = vsyncadd [#allocation4], %s525
      %s527 = sshll.u32 [#allocation7], 4
      %s528 = int_to_ptr.vmem [resolvable:$true] %s527
      %533 = dma.vmem_to_hbm [thread:$0]  %s528, 4096, %s2, [#allocation4], 256, 256, 16
    $region25: #{tpu_custom_call.1} parent=1 // pred_fallthru
      _
    // Predicated region
    $region26: #{tpu_custom_call.1} parent=1 // pred_check
      _
    $region27: #{tpu_custom_call.1} parent=1 // pred_check_branch
      %535 = sbr.rel (0) target = $region29
    $region28: #{tpu_custom_call.1} parent=1 // pred_region
      %s537 = ssub.s32 32, 32
      %538 = vsyncadd [#allocation9], %s537
      %s540 = sshll.u32 [#allocation8], 4
      %s541 = int_to_ptr.vmem [resolvable:$true] %s540
      %543 = dma.vmem_to_hbm [thread:$0]  %s541, 32, %s3, [#allocation9]
    $region29: #{tpu_custom_call.1} parent=1 // pred_fallthru
      _
    // Predicated region
    $region30: #{tpu_custom_call.1} parent=1 // pred_check
      _
    $region31: #{tpu_custom_call.1} parent=1 // pred_check_branch
      %545 = sbr.rel (0) target = $region33
    $region32: #{tpu_custom_call.1} parent=1 // pred_region
      %s547 = ssub.s32 32, 32
      %548 = vsyncadd [#allocation9], %s547
      %s550 = sshll.u32 [#allocation10], 4
      %s551 = int_to_ptr.vmem [resolvable:$true] %s550
      %553 = dma.vmem_to_hbm [thread:$0]  %s551, 32, %s4, [#allocation9]
    $region33: #{tpu_custom_call.1} parent=1 // pred_fallthru
      _
    // Predicated region
    $region34: #{tpu_custom_call.1} parent=1 // pred_check
      _
    $region35: #{tpu_custom_call.1} parent=1 // pred_check_branch
      %555 = sbr.rel (0) target = $region37
    $region36: #{tpu_custom_call.1} parent=1 // pred_region
      %556 = dma.done [#allocation4], 4096
    $region37: #{tpu_custom_call.1} parent=1 // pred_fallthru
      _
    // Predicated region
    $region38: #{tpu_custom_call.1} parent=1 // pred_check
      _
    $region39: #{tpu_custom_call.1} parent=1 // pred_check_branch
      %558 = sbr.rel (0) target = $region41
    $region40: #{tpu_custom_call.1} parent=1 // pred_region
      %559 = dma.done [#allocation9], 32
    $region41: #{tpu_custom_call.1} parent=1 // pred_fallthru
      _
    // Predicated region
    $region42: #{tpu_custom_call.1} parent=1 // pred_check
      _
    $region43: #{tpu_custom_call.1} parent=1 // pred_check_branch
      %561 = sbr.rel (0) target = $region45
    $region44: #{tpu_custom_call.1} parent=1 // pred_region
      %562 = dma.done [#allocation9], 32
    $region45: #{tpu_custom_call.1} parent=1 // pred_fallthru
      _
    %563 = vsyncpa [#allocation3], 1
    %564 = vsyncpa [#allocation6], 1
    %565 = vsyncpa [#allocation4], 1
    %566 = vsyncpa [#allocation9], 1

</llo_original>
